<compile_context>
chip_gen: v7x
topology: tpu7x:2x2x1
jax: 0.10.0
libtpu: 0.0.40
codegen_flags: <defaults>
</compile_context>

<pallas_src>
import functools

import jax
import jax.numpy as jnp
from jax.experimental import pallas as pl
from jax.experimental.pallas import tpu as pltpu


def _resnet_block_kernel(x_ref, w1_ref, b1_ref, w2_ref, b2_ref, mask_ref,
                         out_ref, mid_ref, *,
                         Lp, Gpre, Wp, ks, pad, alpha, CoutP, Ltot):
    """Fused conv1 -> LeakyReLU -> conv2 -> +residual for `pack` batch images.

    x_ref    : (CinP,  Ltot)   guard-banded, zero-padded, flattened input (lanes = spatial)
    w1_ref   : (CoutP, ks*ks*CinP)   fused block-diagonal im2col weight
    b1_ref   : (CoutP, 1)
    w2_ref   : (CoutP, ks*ks*CoutP)
    b2_ref   : (CoutP, 1)
    mask_ref : (1, Lp)   1.0 on real (interior) output pixels, 0.0 on halo / Lp padding
    out_ref  : (CoutP, Lp)   lane-dense output in the padded/flattened frame
    mid_ref  : (CoutP, Ltot) persistent VMEM scratch: guard-banded conv1 activation
    """
    def im2col(src_ref):
        # ks*ks lane-offset slices of the guard-banded flat buffer, stacked on the
        # contraction (sublane) axis -> (ks*ks*C, Lp).  One slab, one MXU dot.
        taps = []
        for dy in range(ks):
            for dx in range(ks):
                s = (dy - pad) * Wp + (dx - pad)
                taps.append(src_ref[:, Gpre + s: Gpre + s + Lp])
        return jnp.concatenate(taps, axis=0)

    mask = mask_ref[...]                                    # (1, Lp), broadcasts over sublanes

    # ---- conv1 (single fused contraction) + LeakyReLU(alpha) ----
    y = jnp.dot(w1_ref[...], im2col(x_ref),
                preferred_element_type=jnp.float32) + b1_ref[...]
    y = jnp.where(y > 0, y, alpha * y)

    # ---- stage into guard-banded scratch (conv2's zero padding) ----
    # Guard bands zeroed once (scratch persists across grid steps); the mask below
    # re-zeros the in-frame halo every step — required for correctness.
    @pl.when(pl.program_id(0) == 0)
    def _():
        mid_ref[:, :Gpre] = jnp.zeros((CoutP, Gpre), jnp.float32)
        mid_ref[:, Gpre + Lp:] = jnp.zeros((CoutP, Ltot - Gpre - Lp), jnp.float32)

    mid_ref[:, Gpre:Gpre + Lp] = y * mask

    # ---- conv2 (single fused contraction) + residual ----
    z = jnp.dot(w2_ref[...], im2col(mid_ref),
                preferred_element_type=jnp.float32) + b2_ref[...]
    # Halo / Lp-padding lanes hold garbage that the wrapper's interior slice discards.
    out_ref[...] = z + x_ref[:, Gpre:Gpre + Lp]


def resnet_block(x_nchw, w1, b1, w2, b2, ks):
    """x_nchw: (N, Cin, H, W);  w1: (Cout, Cin, ks, ks);  w2: (Cout, Cout, ks, ks)."""
    N, Cin, H, W = x_nchw.shape
    Cout = w1.shape[0]
    assert Cin == Cout, "residual add requires in_dim == out_dim"
    assert ks % 2 == 1, "PyTorch padding=ks//2 only matches 'same' conv for odd ks"

    p = ks // 2
    Hp, Wp = H + 2 * p, W + 2 * p
    L = Hp * Wp
    Lp = ((L + 127) // 128) * 128              # lane-dense compute/store length
    Gtap = p * (Wp + 1)                        # max |tap shift| in the flattened frame
    g_pre = -(-Gtap // Wp)                     # guard rows before the frame
    Gpre = g_pre * Wp                          # guard lanes before the frame
    g_post = -(-((Lp - L) + Gtap) // Wp)       # guard rows after the frame
    Ltot = Gpre + L + g_post * Wp

    # Pack 2 images per grid step so channels fill all 8 f32 sublanes.
    pack = 2 if N % 2 == 0 else 1
    NB = N // pack
    CinP, CoutP = pack * Cin, pack * Cout

    # ONE padding pass: guard rows + conv zero-padding + flatten -> final layout directly.
    x = x_nchw.astype(jnp.float32)
    xg = jnp.pad(x, ((0, 0), (0, 0), (p + g_pre, p + g_post), (p, p)))
    xg = xg.reshape(N, Cin, Ltot).reshape(NB, CinP, Ltot)

    def fuse_weight(w):
        # (O, I, ks, ks) -> block-diagonal (pack*O, ks*ks*pack*I) im2col weight slab.
        O, I = w.shape[0], w.shape[1]
        wt = jnp.transpose(w, (2, 3, 0, 1)).astype(jnp.float32)          # (ks, ks, O, I)
        eye = jnp.eye(pack, dtype=jnp.float32)
        wb = jnp.einsum('pq,klij->klpiqj', eye, wt).reshape(ks, ks, pack * O, pack * I)
        return jnp.transpose(wb, (2, 0, 1, 3)).reshape(pack * O, ks * ks * pack * I)

    w1f, w2f = fuse_weight(w1), fuse_weight(w2)
    b1f = jnp.tile(b1.astype(jnp.float32), pack).reshape(CoutP, 1)
    b2f = jnp.tile(b2.astype(jnp.float32), pack).reshape(CoutP, 1)

    # Precomputed interior mask over the Lp-padded flattened frame.
    idx = jnp.arange(Lp)
    r, c = idx // Wp, idx % Wp
    interior = (idx < L) & (r >= p) & (r < p + H) & (c >= p) & (c < p + W)
    mask = interior.astype(jnp.float32).reshape(1, Lp)

    kernel = functools.partial(
        _resnet_block_kernel,
        Lp=Lp, Gpre=Gpre, Wp=Wp, ks=ks, pad=p, alpha=0.2, CoutP=CoutP, Ltot=Ltot)

    out_flat = pl.pallas_call(
        kernel,
        out_shape=jax.ShapeDtypeStruct((NB, CoutP, Lp), jnp.float32),
        grid=(NB,),
        in_specs=[
            pl.BlockSpec((pl.Squeezed(), CinP, Ltot), lambda n: (n, 0, 0)),
            pl.BlockSpec(w1f.shape, lambda n: (0, 0)),
            pl.BlockSpec((CoutP, 1), lambda n: (0, 0)),
            pl.BlockSpec(w2f.shape, lambda n: (0, 0)),
            pl.BlockSpec((CoutP, 1), lambda n: (0, 0)),
            pl.BlockSpec((1, Lp), lambda n: (0, 0)),
        ],
        out_specs=pl.BlockSpec((pl.Squeezed(), CoutP, Lp), lambda n: (n, 0, 0)),
        scratch_shapes=[pltpu.VMEM((CoutP, Ltot), jnp.float32)],
        compiler_params=pltpu.CompilerParams(dimension_semantics=("parallel",)),
    )(xg, w1f, b1f, w2f, b2f, mask)

    # Unpack batches, drop the Lp padding and the halo; return NCHW.
    out = out_flat.reshape(N, Cout, Lp)[:, :, :L]
    out = out.reshape(N, Cout, Hp, Wp)[:, :, p:p + H, p:p + W]
    return out


resnet_block = jax.jit(resnet_block, static_argnums=(5,))


def _reference_block(x, w1, b1, w2, b2, ks):
    """Pure-JAX NCHW reference (mirrors the PyTorch forward) for correctness check."""
    pad = ks // 2
    dn = jax.lax.conv_dimension_numbers(x.shape, w1.shape, ('NCHW', 'OIHW', 'NCHW'))
    y = jax.lax.conv_general_dilated(x, w1, (1, 1), [(pad, pad), (pad, pad)],
                                     dimension_numbers=dn)
    y = y + b1.reshape(1, -1, 1, 1)
    y = jnp.where(y > 0, y, 0.2 * y)
    z = jax.lax.conv_general_dilated(y, w2, (1, 1), [(pad, pad), (pad, pad)],
                                     dimension_numbers=dn)
    z = z + b2.reshape(1, -1, 1, 1)
    return z + x


if __name__ == "__main__":
    # Small shapes consistent with ResnetBlock(in_dim=4, out_dim=4, ks=3)
    N, C, H, W, ks = 2, 4, 16, 16, 3

    key = jax.random.PRNGKey(0)
    kx, kw1, kb1, kw2, kb2 = jax.random.split(key, 5)

    x = jax.random.normal(kx, (N, C, H, W), jnp.float32)
    # PyTorch Conv2d parameter shapes: OIHW weight, (O,) bias
    fan_in = C * ks * ks
    w1 = jax.random.normal(kw1, (C, C, ks, ks), jnp.float32) / jnp.sqrt(fan_in)
    b1 = jax.random.normal(kb1, (C,), jnp.float32) * 0.1
    w2 = jax.random.normal(kw2, (C, C, ks, ks), jnp.float32) / jnp.sqrt(fan_in)
    b2 = jax.random.normal(kb2, (C,), jnp.float32) * 0.1

    out = jax.block_until_ready(resnet_block(x, w1, b1, w2, b2, ks))
    ref = jax.block_until_ready(_reference_block(x, w1, b1, w2, b2, ks))

    assert out.shape == (N, C, H, W)
    assert jnp.allclose(out, ref, atol=1e-4, rtol=1e-4), "Pallas output mismatch vs reference"

    print("KERNEL_OK")
</pallas_src>

<mosaic_0001>
module attributes {stable_mosaic.version = 11 : i64} {
  func.func @_resnet_block_kernel(%arg0: i32, %arg1: memref<1x8x450xf32, #tpu.memory_space<vmem>>, %arg2: memref<8x72xf32, #tpu.memory_space<vmem>>, %arg3: memref<8x1xf32, #tpu.memory_space<vmem>>, %arg4: memref<8x72xf32, #tpu.memory_space<vmem>>, %arg5: memref<8x1xf32, #tpu.memory_space<vmem>>, %arg6: memref<1x384xf32, #tpu.memory_space<vmem>>, %arg7: memref<1x8x384xf32, #tpu.memory_space<vmem>>, %arg8: memref<8x450xf32, #tpu.memory_space<vmem>>) attributes {dimension_semantics = [#tpu.dimension_semantics<parallel>], iteration_bounds = array<i64: 1>, scalar_prefetch = 0 : i64, scratch_operands = 1 : i64, tpu.core_type = #tpu.core_type<tc>, window_params = [{transform_indices = @transform_0, window_bounds = array<i64: 1, 8, 450>}, {pipeline_mode = #tpu.pipeline_mode<synchronous>, transform_indices = @transform_1, window_bounds = array<i64: 8, 72>}, {pipeline_mode = #tpu.pipeline_mode<synchronous>, transform_indices = @transform_2, window_bounds = array<i64: 8, 1>}, {pipeline_mode = #tpu.pipeline_mode<synchronous>, transform_indices = @transform_3, window_bounds = array<i64: 8, 72>}, {pipeline_mode = #tpu.pipeline_mode<synchronous>, transform_indices = @transform_4, window_bounds = array<i64: 8, 1>}, {pipeline_mode = #tpu.pipeline_mode<synchronous>, transform_indices = @transform_5, window_bounds = array<i64: 1, 384>}, {transform_indices = @transform_6, window_bounds = array<i64: 1, 8, 384>}]} {
    %c0 = arith.constant 0 : index
    %c0_0 = arith.constant 0 : index
    %0 = vector.load %arg6[%c0, %c0_0] : memref<1x384xf32, #tpu.memory_space<vmem>>, vector<1x384xf32>
    %c0_1 = arith.constant 0 : index
    %c0_2 = arith.constant 0 : index
    %1 = vector.load %arg2[%c0_1, %c0_2] : memref<8x72xf32, #tpu.memory_space<vmem>>, vector<8x72xf32>
    %c0_3 = arith.constant 0 : index
    %c0_4 = arith.constant 0 : index
    %c17 = arith.constant 17 : index
    %2 = vector.load %arg1[%c0_3, %c0_4, %c17] : memref<1x8x450xf32, #tpu.memory_space<vmem>>, vector<1x8x384xf32>
    %3 = vector.shape_cast %2 : vector<1x8x384xf32> to vector<8x384xf32>
    %c0_5 = arith.constant 0 : index
    %c0_6 = arith.constant 0 : index
    %c18 = arith.constant 18 : index
    %4 = vector.load %arg1[%c0_5, %c0_6, %c18] : memref<1x8x450xf32, #tpu.memory_space<vmem>>, vector<1x8x384xf32>
    %5 = vector.shape_cast %4 : vector<1x8x384xf32> to vector<8x384xf32>
    %c0_7 = arith.constant 0 : index
    %c0_8 = arith.constant 0 : index
    %c19 = arith.constant 19 : index
    %6 = vector.load %arg1[%c0_7, %c0_8, %c19] : memref<1x8x450xf32, #tpu.memory_space<vmem>>, vector<1x8x384xf32>
    %7 = vector.shape_cast %6 : vector<1x8x384xf32> to vector<8x384xf32>
    %c0_9 = arith.constant 0 : index
    %c0_10 = arith.constant 0 : index
    %c35 = arith.constant 35 : index
    %8 = vector.load %arg1[%c0_9, %c0_10, %c35] : memref<1x8x450xf32, #tpu.memory_space<vmem>>, vector<1x8x384xf32>
    %9 = vector.shape_cast %8 : vector<1x8x384xf32> to vector<8x384xf32>
    %c0_11 = arith.constant 0 : index
    %c0_12 = arith.constant 0 : index
    %c36 = arith.constant 36 : index
    %10 = vector.load %arg1[%c0_11, %c0_12, %c36] : memref<1x8x450xf32, #tpu.memory_space<vmem>>, vector<1x8x384xf32>
    %11 = vector.shape_cast %10 : vector<1x8x384xf32> to vector<8x384xf32>
    %c0_13 = arith.constant 0 : index
    %c0_14 = arith.constant 0 : index
    %c37 = arith.constant 37 : index
    %12 = vector.load %arg1[%c0_13, %c0_14, %c37] : memref<1x8x450xf32, #tpu.memory_space<vmem>>, vector<1x8x384xf32>
    %13 = vector.shape_cast %12 : vector<1x8x384xf32> to vector<8x384xf32>
    %c0_15 = arith.constant 0 : index
    %c0_16 = arith.constant 0 : index
    %c53 = arith.constant 53 : index
    %14 = vector.load %arg1[%c0_15, %c0_16, %c53] : memref<1x8x450xf32, #tpu.memory_space<vmem>>, vector<1x8x384xf32>
    %15 = vector.shape_cast %14 : vector<1x8x384xf32> to vector<8x384xf32>
    %c0_17 = arith.constant 0 : index
    %c0_18 = arith.constant 0 : index
    %c54 = arith.constant 54 : index
    %16 = vector.load %arg1[%c0_17, %c0_18, %c54] : memref<1x8x450xf32, #tpu.memory_space<vmem>>, vector<1x8x384xf32>
    %17 = vector.shape_cast %16 : vector<1x8x384xf32> to vector<8x384xf32>
    %c0_19 = arith.constant 0 : index
    %c0_20 = arith.constant 0 : index
    %c55 = arith.constant 55 : index
    %18 = vector.load %arg1[%c0_19, %c0_20, %c55] : memref<1x8x450xf32, #tpu.memory_space<vmem>>, vector<1x8x384xf32>
    %19 = vector.shape_cast %18 : vector<1x8x384xf32> to vector<8x384xf32>
    %20 = tpu.concatenate %3, %5, %7, %9, %11, %13, %15, %17, %19 in 0 : vector<8x384xf32>, vector<8x384xf32>, vector<8x384xf32>, vector<8x384xf32>, vector<8x384xf32>, vector<8x384xf32>, vector<8x384xf32>, vector<8x384xf32>, vector<8x384xf32> -> vector<72x384xf32>
    %cst = arith.constant dense<0.000000e+00> : vector<8x384xf32>
    %21 = tpu.matmul %1, %20, %cst {dimension_numbers = #tpu.dot_dimension_numbers<[1], [0], [0], [1], [0, 0, 1, 1], [], []>} : vector<8x72xf32>, vector<72x384xf32>, vector<8x384xf32> -> vector<8x384xf32>
    %c0_21 = arith.constant 0 : index
    %c0_22 = arith.constant 0 : index
    %22 = vector.load %arg3[%c0_21, %c0_22] : memref<8x1xf32, #tpu.memory_space<vmem>>, vector<8x1xf32>
    %23 = vector.broadcast %22 : vector<8x1xf32> to vector<8x384xf32>
    %24 = arith.addf %21, %23 : vector<8x384xf32>
    %cst_23 = arith.constant 0.000000e+00 : f32
    %25 = vector.broadcast %cst_23 : f32 to vector<8x384xf32>
    %26 = arith.cmpf ogt, %24, %25 : vector<8x384xf32>
    %cst_24 = arith.constant 2.000000e-01 : f32
    %27 = vector.broadcast %cst_24 : f32 to vector<8x384xf32>
    %28 = arith.mulf %27, %24 : vector<8x384xf32>
    %29 = arith.select %26, %24, %28 : vector<8x384xi1>, vector<8x384xf32>
    %c0_i32 = arith.constant 0 : i32
    %30 = arith.cmpi eq, %arg0, %c0_i32 : i32
    %31 = arith.extui %30 : i1 to i32
    %c0_i32_25 = arith.constant 0 : i32
    %32 = arith.cmpi ne, %31, %c0_i32_25 : i32
    scf.if %32 {
      %cst_57 = arith.constant 0.000000e+00 : f32
      %57 = vector.broadcast %cst_57 : f32 to vector<8x36xf32>
      %c0_58 = arith.constant 0 : index
      %c0_59 = arith.constant 0 : index
      %58 = vector.load %arg8[%c0_58, %c0_59] : memref<8x450xf32, #tpu.memory_space<vmem>>, vector<8x36xf32>
      tpu.vector_store %arg8[%c0_58, %c0_59], %57 {strides = array<i32>} : memref<8x450xf32, #tpu.memory_space<vmem>>, vector<8x36xf32>,
      %cst_60 = arith.constant 0.000000e+00 : f32
      %59 = vector.broadcast %cst_60 : f32 to vector<8x30xf32>
      %c0_61 = arith.constant 0 : index
      %c420 = arith.constant 420 : index
      %60 = vector.load %arg8[%c0_61, %c420] : memref<8x450xf32, #tpu.memory_space<vmem>>, vector<8x30xf32>
      tpu.vector_store %arg8[%c0_61, %c420], %59 {strides = array<i32>} : memref<8x450xf32, #tpu.memory_space<vmem>>, vector<8x30xf32>,
    } else {
    }
    %33 = vector.broadcast %0 : vector<1x384xf32> to vector<8x384xf32>
    %34 = arith.mulf %29, %33 : vector<8x384xf32>
    %c0_26 = arith.constant 0 : index
    %c36_27 = arith.constant 36 : index
    %35 = vector.load %arg8[%c0_26, %c36_27] : memref<8x450xf32, #tpu.memory_space<vmem>>, vector<8x384xf32>
    tpu.vector_store %arg8[%c0_26, %c36_27], %34 {strides = array<i32>} : memref<8x450xf32, #tpu.memory_space<vmem>>, vector<8x384xf32>,
    %c0_28 = arith.constant 0 : index
    %c0_29 = arith.constant 0 : index
    %36 = vector.load %arg4[%c0_28, %c0_29] : memref<8x72xf32, #tpu.memory_space<vmem>>, vector<8x72xf32>
    %c0_30 = arith.constant 0 : index
    %c17_31 = arith.constant 17 : index
    %37 = vector.load %arg8[%c0_30, %c17_31] : memref<8x450xf32, #tpu.memory_space<vmem>>, vector<8x384xf32>
    %c0_32 = arith.constant 0 : index
    %c18_33 = arith.constant 18 : index
    %38 = vector.load %arg8[%c0_32, %c18_33] : memref<8x450xf32, #tpu.memory_space<vmem>>, vector<8x384xf32>
    %c0_34 = arith.constant 0 : index
    %c19_35 = arith.constant 19 : index
    %39 = vector.load %arg8[%c0_34, %c19_35] : memref<8x450xf32, #tpu.memory_space<vmem>>, vector<8x384xf32>
    %c0_36 = arith.constant 0 : index
    %c35_37 = arith.constant 35 : index
    %40 = vector.load %arg8[%c0_36, %c35_37] : memref<8x450xf32, #tpu.memory_space<vmem>>, vector<8x384xf32>
    %c0_38 = arith.constant 0 : index
    %c36_39 = arith.constant 36 : index
    %41 = vector.load %arg8[%c0_38, %c36_39] : memref<8x450xf32, #tpu.memory_space<vmem>>, vector<8x384xf32>
    %c0_40 = arith.constant 0 : index
    %c37_41 = arith.constant 37 : index
    %42 = vector.load %arg8[%c0_40, %c37_41] : memref<8x450xf32, #tpu.memory_space<vmem>>, vector<8x384xf32>
    %c0_42 = arith.constant 0 : index
    %c53_43 = arith.constant 53 : index
    %43 = vector.load %arg8[%c0_42, %c53_43] : memref<8x450xf32, #tpu.memory_space<vmem>>, vector<8x384xf32>
    %c0_44 = arith.constant 0 : index
    %c54_45 = arith.constant 54 : index
    %44 = vector.load %arg8[%c0_44, %c54_45] : memref<8x450xf32, #tpu.memory_space<vmem>>, vector<8x384xf32>
    %c0_46 = arith.constant 0 : index
    %c55_47 = arith.constant 55 : index
    %45 = vector.load %arg8[%c0_46, %c55_47] : memref<8x450xf32, #tpu.memory_space<vmem>>, vector<8x384xf32>
    %46 = tpu.concatenate %37, %38, %39, %40, %41, %42, %43, %44, %45 in 0 : vector<8x384xf32>, vector<8x384xf32>, vector<8x384xf32>, vector<8x384xf32>, vector<8x384xf32>, vector<8x384xf32>, vector<8x384xf32>, vector<8x384xf32>, vector<8x384xf32> -> vector<72x384xf32>
    %cst_48 = arith.constant dense<0.000000e+00> : vector<8x384xf32>
    %47 = tpu.matmul %36, %46, %cst_48 {dimension_numbers = #tpu.dot_dimension_numbers<[1], [0], [0], [1], [0, 0, 1, 1], [], []>} : vector<8x72xf32>, vector<72x384xf32>, vector<8x384xf32> -> vector<8x384xf32>
    %c0_49 = arith.constant 0 : index
    %c0_50 = arith.constant 0 : index
    %48 = vector.load %arg5[%c0_49, %c0_50] : memref<8x1xf32, #tpu.memory_space<vmem>>, vector<8x1xf32>
    %49 = vector.broadcast %48 : vector<8x1xf32> to vector<8x384xf32>
    %50 = arith.addf %47, %49 : vector<8x384xf32>
    %c0_51 = arith.constant 0 : index
    %c0_52 = arith.constant 0 : index
    %c36_53 = arith.constant 36 : index
    %51 = vector.load %arg1[%c0_51, %c0_52, %c36_53] : memref<1x8x450xf32, #tpu.memory_space<vmem>>, vector<1x8x384xf32>
    %52 = vector.shape_cast %51 : vector<1x8x384xf32> to vector<8x384xf32>
    %53 = arith.addf %50, %52 : vector<8x384xf32>
    %c0_54 = arith.constant 0 : index
    %c0_55 = arith.constant 0 : index
    %c0_56 = arith.constant 0 : index
    %54 = vector.load %arg7[%c0_54, %c0_55, %c0_56] : memref<1x8x384xf32, #tpu.memory_space<vmem>>, vector<1x8x384xf32>
    %55 = vector.shape_cast %54 : vector<1x8x384xf32> to vector<8x384xf32>
    %56 = vector.shape_cast %53 : vector<8x384xf32> to vector<1x8x384xf32>
    tpu.vector_store %arg7[%c0_54, %c0_55, %c0_56], %56 {strides = array<i32>} : memref<1x8x384xf32, #tpu.memory_space<vmem>>, vector<1x8x384xf32>,
    return
  }
  func.func @transform_0(%arg0: i32) -> (i32, i32, i32) {
    %c0_i32 = arith.constant 0 : i32
    %c0_i32_0 = arith.constant 0 : i32
    %c0_i32_1 = arith.constant 0 : i32
    return %arg0, %c0_i32, %c0_i32_0 : i32, i32, i32
  }
  func.func @transform_1(%arg0: i32) -> (i32, i32) {
    %c0_i32 = arith.constant 0 : i32
    %c0_i32_0 = arith.constant 0 : i32
    %c0_i32_1 = arith.constant 0 : i32
    return %c0_i32, %c0_i32_0 : i32, i32
  }
  func.func @transform_2(%arg0: i32) -> (i32, i32) {
    %c0_i32 = arith.constant 0 : i32
    %c0_i32_0 = arith.constant 0 : i32
    %c0_i32_1 = arith.constant 0 : i32
    return %c0_i32, %c0_i32_0 : i32, i32
  }
  func.func @transform_3(%arg0: i32) -> (i32, i32) {
    %c0_i32 = arith.constant 0 : i32
    %c0_i32_0 = arith.constant 0 : i32
    %c0_i32_1 = arith.constant 0 : i32
    return %c0_i32, %c0_i32_0 : i32, i32
  }
  func.func @transform_4(%arg0: i32) -> (i32, i32) {
    %c0_i32 = arith.constant 0 : i32
    %c0_i32_0 = arith.constant 0 : i32
    %c0_i32_1 = arith.constant 0 : i32
    return %c0_i32, %c0_i32_0 : i32, i32
  }
  func.func @transform_5(%arg0: i32) -> (i32, i32) {
    %c0_i32 = arith.constant 0 : i32
    %c0_i32_0 = arith.constant 0 : i32
    %c0_i32_1 = arith.constant 0 : i32
    return %c0_i32, %c0_i32_0 : i32, i32
  }
  func.func @transform_6(%arg0: i32) -> (i32, i32, i32) {
    %c0_i32 = arith.constant 0 : i32
    %c0_i32_0 = arith.constant 0 : i32
    %c0_i32_1 = arith.constant 0 : i32
    return %arg0, %c0_i32, %c0_i32_0 : i32, i32, i32
  }
}

</mosaic_0001>

<llo_original>
// kernel: tile.13
$region0: #{tile.13}
  #allocation0 [shape = 's32[1]{0}', space=sflag, size = 0x4, scoped, tag = 'scoped memory for tile.13']
  %s0 = inlined_call_operand.vmem [shape: f32[4], index: 0, kind: input, shape index: {}]
  %s1 = inlined_call_operand.vmem [shape: f32[2,4], index: 1, kind: output, shape index: {}]
  // Predicated region
  $region2: #{tile.13} parent=0 // pred_check
    _
  $region3: #{tile.13} parent=0 // pred_check_branch
    %3 = sbr.rel (0) target = $region5
  $region4: #{tile.13} parent=0 // pred_region
    _
  $region5: #{tile.13} parent=0 // pred_fallthru
    _
  %v4 = vld [vmem:[%s0] ss:$0 sm:$0xff]
  %5 = vst [vmem:[%s1] sm:$0x3] %v4

// kernel: tile.0
$region0: #{tile.0}
  %s0 = inlined_call_operand.vmem [shape: f32[2,4], index: 0, kind: input, shape index: {}]
  %s1 = inlined_call_operand.vmem [shape: f32[8,1], index: 1, kind: output, shape index: {}]
  $region1: #{tile.0} parent=0
    #allocation0 [shape = 'u8[4096]{0}', space=vmem, size = 0x1000, scoped, tag = 'scoped mem for input reshape']
    %s3 = sshllo.u32 0, 2
    %v4 = vld [vmem:[%s0] sm:%s3]
    %5 = vst [vmem:[#allocation0] sm:%s3] %v4
    %v6 = vld [vmem:[#allocation0] sm:$0x3]
    %vm7 = vcmask 7168
    %8 = vst.msk [vmem:[%s1] ss:$4 sm:$0x3] %vm7, %v6
    %v9 = vld [vmem:[#allocation0] sm:$0x3]
    %10 = vrot.lane.b32.xlu0 %v9, 127
    %v11 = vpop.permute.xlu0 %10
    %vm12 = vcmask 7168
    %s13 = scalar_lea.vmem %s1, 1
    %14 = vst.msk [vmem:[%s13] ss:$4 sm:$0x3] %vm12, %v11
    %v15 = vld [vmem:[#allocation0] sm:$0x3]
    %16 = vrot.lane.b32.xlu0 %v15, 126
    %v17 = vpop.permute.xlu0 %16
    %vm18 = vcmask 7168
    %s19 = scalar_lea.vmem %s1, 2
    %20 = vst.msk [vmem:[%s19] ss:$4 sm:$0x3] %vm18, %v17
    %v21 = vld [vmem:[#allocation0] sm:$0x3]
    %22 = vrot.lane.b32.xlu0 %v21, 125
    %v23 = vpop.permute.xlu0 %22
    %vm24 = vcmask 7168
    %s25 = scalar_lea.vmem %s1, 3
    %26 = vst.msk [vmem:[%s25] ss:$4 sm:$0x3] %vm24, %v23

// kernel: resnet_block.1
$region0: #{resnet_block.1}
  #allocation0 [shape = 'u32[]', space=smem, size = 0x4, offset = 0x4, fixed_abs, tag = 'smem constant byte address 0x4 - core index']
  #allocation1 [shape = 'u32[144,128]{1,0:T(1,128)}', space=vmem, size = 0x12000, scoped, tag = 'internal scratch']
  #allocation2 [shape = 'f32[8,450]{1,0:T(8,128)}', space=vmem, size = 0x4000, scoped, tag = 'scratch operand']
  %s0 = inlined_call_operand.vmem [shape: f32[1,8,450], index: 0, kind: input, shape index: {}]
  %s1 = inlined_call_operand.vmem [shape: f32[8,72], index: 1, kind: input, shape index: {}]
  %s2 = inlined_call_operand.vmem [shape: f32[8,1], index: 2, kind: input, shape index: {}]
  %s3 = inlined_call_operand.vmem [shape: f32[8,72], index: 3, kind: input, shape index: {}]
  %s4 = inlined_call_operand.vmem [shape: f32[8,1], index: 4, kind: input, shape index: {}]
  %s5 = inlined_call_operand.vmem [shape: f32[1,384], index: 5, kind: input, shape index: {}]
  %s6 = inlined_call_operand.vmem [shape: f32[1,8,384], index: 6, kind: output, shape index: {}]
  %s7 = sld [smem:[#allocation0]]
  $region38: #{resnet_block.1} parent=0
    _
  %s9 = ssub.s32 1, %s7
  %s10 = scalar_select 0, %s9, %s7
  // Predicated region
  $region2: #{resnet_block.1} parent=0 // pred_check
    _
  $region3: #{resnet_block.1} parent=0 // pred_check_branch
    %12 = sbr.rel (0) target = $region5
  $region4: #{resnet_block.1} parent=0 // pred_region
    _
  $region5: #{resnet_block.1} parent=0 // pred_fallthru
    _
  // Predicated region
  $region6: #{resnet_block.1} parent=0 // pred_check
    _
  $region7: #{resnet_block.1} parent=0 // pred_check_branch
    %14 = sbr.rel (0) target = $region9
  $region8: #{resnet_block.1} parent=0 // pred_region
    _
  $region9: #{resnet_block.1} parent=0 // pred_fallthru
    _
  // Predicated region
  $region10: #{resnet_block.1} parent=0 // pred_check
    _
  $region11: #{resnet_block.1} parent=0 // pred_check_branch
    %16 = sbr.rel (0) target = $region13
  $region12: #{resnet_block.1} parent=0 // pred_region
    _
  $region13: #{resnet_block.1} parent=0 // pred_fallthru
    _
  // Predicated region
  $region14: #{resnet_block.1} parent=0 // pred_check
    _
  $region15: #{resnet_block.1} parent=0 // pred_check_branch
    %18 = sbr.rel (0) target = $region17
  $region16: #{resnet_block.1} parent=0 // pred_region
    _
  $region17: #{resnet_block.1} parent=0 // pred_fallthru
    _
  // Predicated region
  $region18: #{resnet_block.1} parent=0 // pred_check
    _
  $region19: #{resnet_block.1} parent=0 // pred_check_branch
    %20 = sbr.rel (0) target = $region21
  $region20: #{resnet_block.1} parent=0 // pred_region
    _
  $region21: #{resnet_block.1} parent=0 // pred_fallthru
    _
  // Predicated region
  $region22: #{resnet_block.1} parent=0 // pred_check
    _
  $region23: #{resnet_block.1} parent=0 // pred_check_branch
    %22 = sbr.rel (0) target = $region25
  $region24: #{resnet_block.1} parent=0 // pred_region
    _
  $region25: #{resnet_block.1} parent=0 // pred_fallthru
    _
  %v23 = vld [vmem:[%s5] sm:$0x7]
  %v24 = vld [vmem:[%s1] sm:$0xff]
  %v25 = vld [vmem:[%s0] sm:$0xff]
  %v26 = vld [vmem:[%s0 + $0x8] sm:$0xff]
  %v27 = vld [vmem:[%s0 + $0x10] sm:$0xff]
  %v28 = vld [vmem:[%s0 + $0x18] sm:$0xff]
  %33 = vrot.lane.b32.xlu0 %v25, 127
  %v34 = vpop.permute.xlu0 %33
  %35 = vrot.lane.b32.xlu0 %v26, 127
  %v36 = vpop.permute.xlu0 %35
  %37 = vrot.lane.b32.xlu0 %v27, 127
  %v38 = vpop.permute.xlu0 %37
  %39 = vrot.lane.b32.xlu0 %v28, 127
  %v40 = vpop.permute.xlu0 %39
  %vm41 = vcmask 1039360
  %v42 = vsel %vm41, %v34, %v36
  %v43 = vsel %vm41, %v36, %v38
  %v44 = vsel %vm41, %v38, %v40
  %45 = vrot.lane.b32.xlu0 %v25, 126
  %v46 = vpop.permute.xlu0 %45
  %47 = vrot.lane.b32.xlu0 %v26, 126
  %v48 = vpop.permute.xlu0 %47
  %49 = vrot.lane.b32.xlu0 %v27, 126
  %v50 = vpop.permute.xlu0 %49
  %51 = vrot.lane.b32.xlu0 %v28, 126
  %v52 = vpop.permute.xlu0 %51
  %vm53 = vcmask 1031168
  %v54 = vsel %vm53, %v46, %v48
  %v55 = vsel %vm53, %v48, %v50
  %v56 = vsel %vm53, %v50, %v52
  %57 = vrot.lane.b32.xlu0 %v25, 110
  %v58 = vpop.permute.xlu0 %57
  %59 = vrot.lane.b32.xlu0 %v26, 110
  %v60 = vpop.permute.xlu0 %59
  %61 = vrot.lane.b32.xlu0 %v27, 110
  %v62 = vpop.permute.xlu0 %61
  %63 = vrot.lane.b32.xlu0 %v28, 110
  %v64 = vpop.permute.xlu0 %63
  %vm65 = vcmask 900096
  %v66 = vsel %vm65, %v58, %v60
  %v67 = vsel %vm65, %v60, %v62
  %v68 = vsel %vm65, %v62, %v64
  %69 = vrot.lane.b32.xlu0 %v25, 109
  %v70 = vpop.permute.xlu0 %69
  %71 = vrot.lane.b32.xlu0 %v26, 109
  %v72 = vpop.permute.xlu0 %71
  %73 = vrot.lane.b32.xlu0 %v27, 109
  %v74 = vpop.permute.xlu0 %73
  %75 = vrot.lane.b32.xlu0 %v28, 109
  %v76 = vpop.permute.xlu0 %75
  %vm77 = vcmask 891904
  %v78 = vsel %vm77, %v70, %v72
  %v79 = vsel %vm77, %v72, %v74
  %v80 = vsel %vm77, %v74, %v76
  %81 = vrot.lane.b32.xlu0 %v25, 108
  %v82 = vpop.permute.xlu0 %81
  %83 = vrot.lane.b32.xlu0 %v26, 108
  %v84 = vpop.permute.xlu0 %83
  %85 = vrot.lane.b32.xlu0 %v27, 108
  %v86 = vpop.permute.xlu0 %85
  %87 = vrot.lane.b32.xlu0 %v28, 108
  %v88 = vpop.permute.xlu0 %87
  %vm89 = vcmask 883712
  %v90 = vsel %vm89, %v82, %v84
  %v91 = vsel %vm89, %v84, %v86
  %v92 = vsel %vm89, %v86, %v88
  %93 = vrot.lane.b32.xlu0 %v25, 92
  %v94 = vpop.permute.xlu0 %93
  %95 = vrot.lane.b32.xlu0 %v26, 92
  %v96 = vpop.permute.xlu0 %95
  %97 = vrot.lane.b32.xlu0 %v27, 92
  %v98 = vpop.permute.xlu0 %97
  %99 = vrot.lane.b32.xlu0 %v28, 92
  %v100 = vpop.permute.xlu0 %99
  %vm101 = vcmask 752640
  %v102 = vsel %vm101, %v94, %v96
  %v103 = vsel %vm101, %v96, %v98
  %v104 = vsel %vm101, %v98, %v100
  %105 = vrot.lane.b32.xlu0 %v25, 91
  %v106 = vpop.permute.xlu0 %105
  %107 = vrot.lane.b32.xlu0 %v26, 91
  %v108 = vpop.permute.xlu0 %107
  %109 = vrot.lane.b32.xlu0 %v27, 91
  %v110 = vpop.permute.xlu0 %109
  %111 = vrot.lane.b32.xlu0 %v28, 91
  %v112 = vpop.permute.xlu0 %111
  %vm113 = vcmask 744448
  %v114 = vsel %vm113, %v106, %v108
  %v115 = vsel %vm113, %v108, %v110
  %v116 = vsel %vm113, %v110, %v112
  %117 = vrot.lane.b32.xlu0 %v25, 90
  %v118 = vpop.permute.xlu0 %117
  %119 = vrot.lane.b32.xlu0 %v26, 90
  %v120 = vpop.permute.xlu0 %119
  %121 = vrot.lane.b32.xlu0 %v27, 90
  %v122 = vpop.permute.xlu0 %121
  %123 = vrot.lane.b32.xlu0 %v28, 90
  %v124 = vpop.permute.xlu0 %123
  %vm125 = vcmask 736256
  %v126 = vsel %vm125, %v118, %v120
  %v127 = vsel %vm125, %v120, %v122
  %v128 = vsel %vm125, %v122, %v124
  %v129 = vld [vmem:[%s2] sm:$0xff]
  %131 = vset.pattern.permute.xlu0 0
  %132 = vperm.xlu0 %131, %v129
  %v133 = vpop.permute.xlu0 %132
  %135 = vrot.lane.b32.xlu0 %v25, 111
  %v136 = vpop.permute.xlu0 %135
  %137 = vrot.lane.b32.xlu0 %v26, 111
  %v138 = vpop.permute.xlu0 %137
  %139 = vrot.lane.b32.xlu0 %v27, 111
  %v140 = vpop.permute.xlu0 %139
  %141 = vrot.lane.b32.xlu0 %v28, 111
  %v142 = vpop.permute.xlu0 %141
  %143 = vrot.lane.b32.xlu0 %v42, 111
  %v144 = vpop.permute.xlu0 %143
  %145 = vrot.lane.b32.xlu0 %v43, 111
  %v146 = vpop.permute.xlu0 %145
  %147 = vrot.lane.b32.xlu0 %v44, 111
  %v148 = vpop.permute.xlu0 %147
  %149 = vrot.lane.b32.xlu0 %v40, 111
  %v150 = vpop.permute.xlu0 %149
  %151 = vrot.lane.b32.xlu0 %v54, 111
  %v152 = vpop.permute.xlu0 %151
  %153 = vrot.lane.b32.xlu0 %v55, 111
  %v154 = vpop.permute.xlu0 %153
  %155 = vrot.lane.b32.xlu0 %v56, 111
  %v156 = vpop.permute.xlu0 %155
  %157 = vrot.lane.b32.xlu0 %v52, 111
  %v158 = vpop.permute.xlu0 %157
  %159 = vrot.lane.b32.xlu0 %v66, 111
  %v160 = vpop.permute.xlu0 %159
  %161 = vrot.lane.b32.xlu0 %v67, 111
  %v162 = vpop.permute.xlu0 %161
  %163 = vrot.lane.b32.xlu0 %v68, 111
  %v164 = vpop.permute.xlu0 %163
  %165 = vrot.lane.b32.xlu0 %v64, 111
  %v166 = vpop.permute.xlu0 %165
  %167 = vrot.lane.b32.xlu0 %v78, 111
  %v168 = vpop.permute.xlu0 %167
  %169 = vrot.lane.b32.xlu0 %v79, 111
  %v170 = vpop.permute.xlu0 %169
  %171 = vrot.lane.b32.xlu0 %v80, 111
  %v172 = vpop.permute.xlu0 %171
  %173 = vrot.lane.b32.xlu0 %v76, 111
  %v174 = vpop.permute.xlu0 %173
  %175 = vrot.lane.b32.xlu0 %v90, 111
  %v176 = vpop.permute.xlu0 %175
  %177 = vrot.lane.b32.xlu0 %v91, 111
  %v178 = vpop.permute.xlu0 %177
  %179 = vrot.lane.b32.xlu0 %v92, 111
  %v180 = vpop.permute.xlu0 %179
  %181 = vrot.lane.b32.xlu0 %v88, 111
  %v182 = vpop.permute.xlu0 %181
  %183 = vrot.lane.b32.xlu0 %v102, 111
  %v184 = vpop.permute.xlu0 %183
  %185 = vrot.lane.b32.xlu0 %v103, 111
  %v186 = vpop.permute.xlu0 %185
  %187 = vrot.lane.b32.xlu0 %v104, 111
  %v188 = vpop.permute.xlu0 %187
  %189 = vrot.lane.b32.xlu0 %v100, 111
  %v190 = vpop.permute.xlu0 %189
  %191 = vrot.lane.b32.xlu0 %v114, 111
  %v192 = vpop.permute.xlu0 %191
  %193 = vrot.lane.b32.xlu0 %v115, 111
  %v194 = vpop.permute.xlu0 %193
  %195 = vrot.lane.b32.xlu0 %v116, 111
  %v196 = vpop.permute.xlu0 %195
  %197 = vrot.lane.b32.xlu0 %v112, 111
  %v198 = vpop.permute.xlu0 %197
  %199 = vrot.lane.b32.xlu0 %v126, 111
  %v200 = vpop.permute.xlu0 %199
  %201 = vrot.lane.b32.xlu0 %v127, 111
  %v202 = vpop.permute.xlu0 %201
  %203 = vrot.lane.b32.xlu0 %v128, 111
  %v204 = vpop.permute.xlu0 %203
  %205 = vrot.lane.b32.xlu0 %v124, 111
  %v206 = vpop.permute.xlu0 %205
  %vm207 = vcmask 908288
  %v208 = vsel %vm207, %v136, %v138
  %v209 = vsel %vm207, %v138, %v140
  %v210 = vsel %vm207, %v140, %v142
  %v211 = vsel %vm207, %v144, %v146
  %v212 = vsel %vm207, %v146, %v148
  %v213 = vsel %vm207, %v148, %v150
  %v214 = vsel %vm207, %v152, %v154
  %v215 = vsel %vm207, %v154, %v156
  %v216 = vsel %vm207, %v156, %v158
  %v217 = vsel %vm207, %v160, %v162
  %v218 = vsel %vm207, %v162, %v164
  %v219 = vsel %vm207, %v164, %v166
  %v220 = vsel %vm207, %v168, %v170
  %v221 = vsel %vm207, %v170, %v172
  %v222 = vsel %vm207, %v172, %v174
  %v223 = vsel %vm207, %v176, %v178
  %v224 = vsel %vm207, %v178, %v180
  %v225 = vsel %vm207, %v180, %v182
  %v226 = vsel %vm207, %v184, %v186
  %v227 = vsel %vm207, %v186, %v188
  %v228 = vsel %vm207, %v188, %v190
  %v229 = vsel %vm207, %v192, %v194
  %v230 = vsel %vm207, %v194, %v196
  %v231 = vsel %vm207, %v196, %v198
  %v232 = vsel %vm207, %v200, %v202
  %v233 = vsel %vm207, %v202, %v204
  %v234 = vsel %vm207, %v204, %v206
  %vm262 = vcmask 588800
  %v264 = vsel %vm262, %v24, 0
  %266 = vmatprep.subr.mxu0 %v209
  %267 = vmatpush1.msra.mxu0 %v208
  %268 = vmatprep.subr.mxu0 %v212
  %269 = vmatpush1.msra.mxu0 %v211
  %270 = vmatprep.subr.mxu0 %v215
  %271 = vmatpush1.msra.mxu0 %v214
  %272 = vmatprep.subr.mxu0 %v218
  %273 = vmatpush1.msra.mxu0 %v217
  %274 = vmatprep.subr.mxu0 %v221
  %275 = vmatpush1.msra.mxu0 %v220
  %276 = vmatprep.subr.mxu0 %v224
  %277 = vmatpush1.msra.mxu0 %v223
  %278 = vmatprep.subr.mxu0 %v227
  %279 = vmatpush1.msra.mxu0 %v226
  %280 = vmatprep.subr.mxu0 %v230
  %281 = vmatpush1.msra.mxu0 %v229
  %282 = vmatprep.subr.mxu0 %v233
  %283 = vmatpush1.msra.mxu0 %v232
  %284 = vmatprep.subr.mxu0 0.0
  %285 = vmatpush1.msra.mxu0 0.0
  %286 = vmatprep.subr.mxu0 0.0
  %287 = vmatpush1.msra.mxu0 0.0
  %288 = vmatprep.subr.mxu0 0.0
  %289 = vmatpush1.msra.mxu0 0.0
  %290 = vmatprep.subr.mxu0 0.0
  %291 = vmatpush1.msra.mxu0 0.0
  %292 = vmatprep.subr.mxu0 0.0
  %293 = vmatpush1.msra.mxu0 0.0
  %294 = vmatprep.subr.mxu0 0.0
  %295 = vmatpush1.msra.mxu0 0.0
  %296 = vmatprep.subr.mxu0 0.0
  %297 = vmatpush1.msra.mxu0 0.0
  %298 = vmatprep.subr.mxu0 0.0
  %299 = vmatpush1.msra.mxu0 0.0
  %300 = vmatprep.subr.mxu0 0.0
  %301 = vmatpush1.msra.mxu0 0.0
  %302 = vmatprep.subr.mxu0 0.0
  %303 = vmatpush1.msra.mxu0 0.0
  %304 = vmatprep.subr.mxu0 0.0
  %305 = vmatpush1.msra.mxu0 0.0
  %306 = vmatprep.subr.mxu0 0.0
  %307 = vmatpush1.msra.mxu0 0.0
  %308 = vmatprep.subr.mxu0 0.0
  %309 = vmatpush1.msra.mxu0 0.0
  %310 = vmatprep.subr.mxu0 0.0
  %311 = vmatpush1.msra.mxu0 0.0
  %312 = vmatprep.subr.mxu0 0.0
  %313 = vmatpush1.msra.mxu0 0.0
  %314 = vmatprep.subr.mxu0 0.0
  %315 = vmatpush1.msra.mxu0 0.0
  %316 = vmatprep.subr.mxu0 0.0
  %317 = vmatpush1.msra.mxu0 0.0
  %318 = vmatprep.subr.mxu0 0.0
  %319 = vmatpush1.msra.mxu0 0.0
  %320 = vmatprep.subr.mxu0 0.0
  %321 = vmatpush1.msra.mxu0 0.0
  %322 = vmatprep.subr.mxu0 0.0
  %323 = vmatpush1.msra.mxu0 0.0
  %324 = vmatprep.subr.mxu0 0.0
  %325 = vmatpush1.msra.mxu0 0.0
  %326 = vmatprep.subr.mxu0 0.0
  %327 = vmatpush1.msra.mxu0 0.0
  %328 = vmatprep.subr.mxu0 0.0
  %329 = vmatpush1.msra.mxu0 0.0
  %330 = vmatprep.mubr.f32.mxu0 0.0
  %331 = vmatmul.mubr.f32.gmra.mrb[0].mxu0 %v264
  %v332 = vpop.f32.mrb[0].mxu0
  %v333 = vadd.f32 %v133, %v332
  %v334 = vpop.f32.mrb[0].mxu0
  %v335 = vadd.f32 %v133, %v334
  %336 = vdwg.mxu0
  %337 = vmatprep.subr.mxu0 0.0
  %338 = vmatpush1.msra.mxu0 %v210
  %339 = vmatprep.subr.mxu0 0.0
  %340 = vmatpush1.msra.mxu0 %v213
  %341 = vmatprep.subr.mxu0 0.0
  %342 = vmatpush1.msra.mxu0 %v216
  %343 = vmatprep.subr.mxu0 0.0
  %344 = vmatpush1.msra.mxu0 %v219
  %345 = vmatprep.subr.mxu0 0.0
  %346 = vmatpush1.msra.mxu0 %v222
  %347 = vmatprep.subr.mxu0 0.0
  %348 = vmatpush1.msra.mxu0 %v225
  %349 = vmatprep.subr.mxu0 0.0
  %350 = vmatpush1.msra.mxu0 %v228
  %351 = vmatprep.subr.mxu0 0.0
  %352 = vmatpush1.msra.mxu0 %v231
  %353 = vmatprep.subr.mxu0 0.0
  %354 = vmatpush1.msra.mxu0 %v234
  %355 = vmatprep.subr.mxu0 0.0
  %356 = vmatpush1.msra.mxu0 0.0
  %357 = vmatprep.subr.mxu0 0.0
  %358 = vmatpush1.msra.mxu0 0.0
  %359 = vmatprep.subr.mxu0 0.0
  %360 = vmatpush1.msra.mxu0 0.0
  %361 = vmatprep.subr.mxu0 0.0
  %362 = vmatpush1.msra.mxu0 0.0
  %363 = vmatprep.subr.mxu0 0.0
  %364 = vmatpush1.msra.mxu0 0.0
  %365 = vmatprep.subr.mxu0 0.0
  %366 = vmatpush1.msra.mxu0 0.0
  %367 = vmatprep.subr.mxu0 0.0
  %368 = vmatpush1.msra.mxu0 0.0
  %369 = vmatprep.subr.mxu0 0.0
  %370 = vmatpush1.msra.mxu0 0.0
  %371 = vmatprep.subr.mxu0 0.0
  %372 = vmatpush1.msra.mxu0 0.0
  %373 = vmatprep.subr.mxu0 0.0
  %374 = vmatpush1.msra.mxu0 0.0
  %375 = vmatprep.subr.mxu0 0.0
  %376 = vmatpush1.msra.mxu0 0.0
  %377 = vmatprep.subr.mxu0 0.0
  %378 = vmatpush1.msra.mxu0 0.0
  %379 = vmatprep.subr.mxu0 0.0
  %380 = vmatpush1.msra.mxu0 0.0
  %381 = vmatprep.subr.mxu0 0.0
  %382 = vmatpush1.msra.mxu0 0.0
  %383 = vmatprep.subr.mxu0 0.0
  %384 = vmatpush1.msra.mxu0 0.0
  %385 = vmatprep.subr.mxu0 0.0
  %386 = vmatpush1.msra.mxu0 0.0
  %387 = vmatprep.subr.mxu0 0.0
  %388 = vmatpush1.msra.mxu0 0.0
  %389 = vmatprep.subr.mxu0 0.0
  %390 = vmatpush1.msra.mxu0 0.0
  %391 = vmatprep.subr.mxu0 0.0
  %392 = vmatpush1.msra.mxu0 0.0
  %393 = vmatprep.subr.mxu0 0.0
  %394 = vmatpush1.msra.mxu0 0.0
  %395 = vmatprep.subr.mxu0 0.0
  %396 = vmatpush1.msra.mxu0 0.0
  %397 = vmatprep.subr.mxu0 0.0
  %398 = vmatpush1.msra.mxu0 0.0
  %399 = vmatprep.subr.mxu0 0.0
  %400 = vmatpush1.msra.mxu0 0.0
  %401 = vmatprep.mubr.f32.mxu0 0.0
  %402 = vmatmul.mubr.f32.gmra.mrb[0].mxu0 %v264
  %v403 = vpop.f32.mrb[0].mxu0
  %v404 = vadd.f32 %v133, %v403
  %v405 = vpop.f32.mrb[0].mxu0
  %406 = vdwg.mxu0
  %vm407 = vcmp.gt.f32.partialorder %v333, 0.0
  %vm408 = vcmp.gt.f32.partialorder %v335, 0.0
  %vm409 = vcmp.gt.f32.partialorder %v404, 0.0
  %v410 = vmul.f32 %v333, 0.2
  %v411 = vmul.f32 %v335, 0.2
  %v412 = vmul.f32 %v404, 0.2
  %v413 = vsel %vm407, %v333, %v410
  %v414 = vsel %vm408, %v335, %v411
  %v415 = vsel %vm409, %v404, %v412
  %p416 = scmp.eq.s32.totalorder 0, 0
  // Predicated region
  $region26: #{resnet_block.1} parent=0 // pred_check
    %p417 = pneg %p416
  $region27: #{resnet_block.1} parent=0 // pred_check_branch
    %419 = sbr.rel (%p417) target = $region29
  $region28: #{resnet_block.1} parent=0 // pred_region
    %vm420 = vcmask 293888
    %421 = vst.msk [vmem:[#allocation2] sm:$0xff] %vm420, 0.0
    %vm422 = vcmask 539936
    %423 = vst.msk [vmem:[#allocation2 + $0x18] sm:$0xff] %vm422, 0.0
  $region29: #{resnet_block.1} parent=0 // pred_fallthru
    _
  %v425 = vlaneseq
  %v426 = vshrl.u32 %v425, 7
  %v427 = vsub.s32 0, %v426
  %v428 = vrot.slane %v23, %v427
  %v429 = vlaneseq
  %v430 = vshrl.u32 %v429, 7
  %v431 = vsub.s32 1, %v430
  %v432 = vrot.slane %v23, %v431
  %v433 = vlaneseq
  %v434 = vshrl.u32 %v433, 7
  %v435 = vsub.s32 2, %v434
  %v436 = vrot.slane %v23, %v435
  %v440 = vmul.f32 %v413, %v428
  %v441 = vmul.f32 %v414, %v432
  %v442 = vmul.f32 %v415, %v436
  %446 = vrot.lane.b32.xlu0 %v440, 36
  %v447 = vpop.permute.xlu0 %446
  %448 = vrot.lane.b32.xlu0 %v441, 36
  %v449 = vpop.permute.xlu0 %448
  %450 = vrot.lane.b32.xlu0 %v442, 36
  %v451 = vpop.permute.xlu0 %450
  %vm452 = vcmask 293888
  %v453 = vsel %vm452, %v447, %v449
  %v454 = vsel %vm452, %v449, %v451
  %vm459 = vcmask 1047840
  %460 = vst.msk [vmem:[#allocation2] sm:$0xff] %vm459, %v447
  %461 = vst [vmem:[#allocation2 + $0x8] sm:$0xff] %v453
  %462 = vst [vmem:[#allocation2 + $0x10] sm:$0xff] %v454
  %463 = vst.msk [vmem:[#allocation2 + $0x18] sm:$0xff] %vm452, %v451
  %v464 = vld [vmem:[%s3] sm:$0xff]
  %v465 = vld [vmem:[#allocation2] sm:$0xff]
  %v466 = vld [vmem:[#allocation2 + $0x8] sm:$0xff]
  %v467 = vld [vmem:[#allocation2 + $0x10] sm:$0xff]
  %v468 = vld [vmem:[#allocation2 + $0x18] sm:$0xff]
  %473 = vrot.lane.b32.xlu0 %v465, 127
  %v474 = vpop.permute.xlu0 %473
  %475 = vrot.lane.b32.xlu0 %v466, 127
  %v476 = vpop.permute.xlu0 %475
  %477 = vrot.lane.b32.xlu0 %v467, 127
  %v478 = vpop.permute.xlu0 %477
  %479 = vrot.lane.b32.xlu0 %v468, 127
  %v480 = vpop.permute.xlu0 %479
  %v481 = vsel %vm41, %v474, %v476
  %v482 = vsel %vm41, %v476, %v478
  %v483 = vsel %vm41, %v478, %v480
  %484 = vrot.lane.b32.xlu0 %v465, 126
  %v485 = vpop.permute.xlu0 %484
  %486 = vrot.lane.b32.xlu0 %v466, 126
  %v487 = vpop.permute.xlu0 %486
  %488 = vrot.lane.b32.xlu0 %v467, 126
  %v489 = vpop.permute.xlu0 %488
  %490 = vrot.lane.b32.xlu0 %v468, 126
  %v491 = vpop.permute.xlu0 %490
  %v492 = vsel %vm53, %v485, %v487
  %v493 = vsel %vm53, %v487, %v489
  %v494 = vsel %vm53, %v489, %v491
  %495 = vrot.lane.b32.xlu0 %v465, 110
  %v496 = vpop.permute.xlu0 %495
  %497 = vrot.lane.b32.xlu0 %v466, 110
  %v498 = vpop.permute.xlu0 %497
  %499 = vrot.lane.b32.xlu0 %v467, 110
  %v500 = vpop.permute.xlu0 %499
  %501 = vrot.lane.b32.xlu0 %v468, 110
  %v502 = vpop.permute.xlu0 %501
  %v503 = vsel %vm65, %v496, %v498
  %v504 = vsel %vm65, %v498, %v500
  %v505 = vsel %vm65, %v500, %v502
  %506 = vrot.lane.b32.xlu0 %v465, 109
  %v507 = vpop.permute.xlu0 %506
  %508 = vrot.lane.b32.xlu0 %v466, 109
  %v509 = vpop.permute.xlu0 %508
  %510 = vrot.lane.b32.xlu0 %v467, 109
  %v511 = vpop.permute.xlu0 %510
  %512 = vrot.lane.b32.xlu0 %v468, 109
  %v513 = vpop.permute.xlu0 %512
  %v514 = vsel %vm77, %v507, %v509
  %v515 = vsel %vm77, %v509, %v511
  %v516 = vsel %vm77, %v511, %v513
  %517 = vrot.lane.b32.xlu0 %v465, 108
  %v518 = vpop.permute.xlu0 %517
  %519 = vrot.lane.b32.xlu0 %v466, 108
  %v520 = vpop.permute.xlu0 %519
  %521 = vrot.lane.b32.xlu0 %v467, 108
  %v522 = vpop.permute.xlu0 %521
  %523 = vrot.lane.b32.xlu0 %v468, 108
  %v524 = vpop.permute.xlu0 %523
  %v525 = vsel %vm89, %v518, %v520
  %v526 = vsel %vm89, %v520, %v522
  %v527 = vsel %vm89, %v522, %v524
  %528 = vrot.lane.b32.xlu0 %v465, 92
  %v529 = vpop.permute.xlu0 %528
  %530 = vrot.lane.b32.xlu0 %v466, 92
  %v531 = vpop.permute.xlu0 %530
  %532 = vrot.lane.b32.xlu0 %v467, 92
  %v533 = vpop.permute.xlu0 %532
  %534 = vrot.lane.b32.xlu0 %v468, 92
  %v535 = vpop.permute.xlu0 %534
  %v536 = vsel %vm101, %v529, %v531
  %v537 = vsel %vm101, %v531, %v533
  %v538 = vsel %vm101, %v533, %v535
  %539 = vrot.lane.b32.xlu0 %v465, 91
  %v540 = vpop.permute.xlu0 %539
  %541 = vrot.lane.b32.xlu0 %v466, 91
  %v542 = vpop.permute.xlu0 %541
  %543 = vrot.lane.b32.xlu0 %v467, 91
  %v544 = vpop.permute.xlu0 %543
  %545 = vrot.lane.b32.xlu0 %v468, 91
  %v546 = vpop.permute.xlu0 %545
  %v547 = vsel %vm113, %v540, %v542
  %v548 = vsel %vm113, %v542, %v544
  %v549 = vsel %vm113, %v544, %v546
  %550 = vrot.lane.b32.xlu0 %v465, 90
  %v551 = vpop.permute.xlu0 %550
  %552 = vrot.lane.b32.xlu0 %v466, 90
  %v553 = vpop.permute.xlu0 %552
  %554 = vrot.lane.b32.xlu0 %v467, 90
  %v555 = vpop.permute.xlu0 %554
  %556 = vrot.lane.b32.xlu0 %v468, 90
  %v557 = vpop.permute.xlu0 %556
  %v558 = vsel %vm125, %v551, %v553
  %v559 = vsel %vm125, %v553, %v555
  %v560 = vsel %vm125, %v555, %v557
  %v561 = vld [vmem:[%s4] sm:$0xff]
  %563 = vset.pattern.permute.xlu0 0
  %564 = vperm.xlu0 %563, %v561
  %v565 = vpop.permute.xlu0 %564
  %567 = vrot.lane.b32.xlu0 %v465, 111
  %v568 = vpop.permute.xlu0 %567
  %569 = vrot.lane.b32.xlu0 %v466, 111
  %v570 = vpop.permute.xlu0 %569
  %571 = vrot.lane.b32.xlu0 %v467, 111
  %v572 = vpop.permute.xlu0 %571
  %573 = vrot.lane.b32.xlu0 %v468, 111
  %v574 = vpop.permute.xlu0 %573
  %575 = vrot.lane.b32.xlu0 %v481, 111
  %v576 = vpop.permute.xlu0 %575
  %577 = vrot.lane.b32.xlu0 %v482, 111
  %v578 = vpop.permute.xlu0 %577
  %579 = vrot.lane.b32.xlu0 %v483, 111
  %v580 = vpop.permute.xlu0 %579
  %581 = vrot.lane.b32.xlu0 %v480, 111
  %v582 = vpop.permute.xlu0 %581
  %583 = vrot.lane.b32.xlu0 %v492, 111
  %v584 = vpop.permute.xlu0 %583
  %585 = vrot.lane.b32.xlu0 %v493, 111
  %v586 = vpop.permute.xlu0 %585
  %587 = vrot.lane.b32.xlu0 %v494, 111
  %v588 = vpop.permute.xlu0 %587
  %589 = vrot.lane.b32.xlu0 %v491, 111
  %v590 = vpop.permute.xlu0 %589
  %591 = vrot.lane.b32.xlu0 %v503, 111
  %v592 = vpop.permute.xlu0 %591
  %593 = vrot.lane.b32.xlu0 %v504, 111
  %v594 = vpop.permute.xlu0 %593
  %595 = vrot.lane.b32.xlu0 %v505, 111
  %v596 = vpop.permute.xlu0 %595
  %597 = vrot.lane.b32.xlu0 %v502, 111
  %v598 = vpop.permute.xlu0 %597
  %599 = vrot.lane.b32.xlu0 %v514, 111
  %v600 = vpop.permute.xlu0 %599
  %601 = vrot.lane.b32.xlu0 %v515, 111
  %v602 = vpop.permute.xlu0 %601
  %603 = vrot.lane.b32.xlu0 %v516, 111
  %v604 = vpop.permute.xlu0 %603
  %605 = vrot.lane.b32.xlu0 %v513, 111
  %v606 = vpop.permute.xlu0 %605
  %607 = vrot.lane.b32.xlu0 %v525, 111
  %v608 = vpop.permute.xlu0 %607
  %609 = vrot.lane.b32.xlu0 %v526, 111
  %v610 = vpop.permute.xlu0 %609
  %611 = vrot.lane.b32.xlu0 %v527, 111
  %v612 = vpop.permute.xlu0 %611
  %613 = vrot.lane.b32.xlu0 %v524, 111
  %v614 = vpop.permute.xlu0 %613
  %615 = vrot.lane.b32.xlu0 %v536, 111
  %v616 = vpop.permute.xlu0 %615
  %617 = vrot.lane.b32.xlu0 %v537, 111
  %v618 = vpop.permute.xlu0 %617
  %619 = vrot.lane.b32.xlu0 %v538, 111
  %v620 = vpop.permute.xlu0 %619
  %621 = vrot.lane.b32.xlu0 %v535, 111
  %v622 = vpop.permute.xlu0 %621
  %623 = vrot.lane.b32.xlu0 %v547, 111
  %v624 = vpop.permute.xlu0 %623
  %625 = vrot.lane.b32.xlu0 %v548, 111
  %v626 = vpop.permute.xlu0 %625
  %627 = vrot.lane.b32.xlu0 %v549, 111
  %v628 = vpop.permute.xlu0 %627
  %629 = vrot.lane.b32.xlu0 %v546, 111
  %v630 = vpop.permute.xlu0 %629
  %631 = vrot.lane.b32.xlu0 %v558, 111
  %v632 = vpop.permute.xlu0 %631
  %633 = vrot.lane.b32.xlu0 %v559, 111
  %v634 = vpop.permute.xlu0 %633
  %635 = vrot.lane.b32.xlu0 %v560, 111
  %v636 = vpop.permute.xlu0 %635
  %637 = vrot.lane.b32.xlu0 %v557, 111
  %v638 = vpop.permute.xlu0 %637
  %v639 = vsel %vm207, %v568, %v570
  %v640 = vsel %vm207, %v570, %v572
  %v641 = vsel %vm207, %v572, %v574
  %v642 = vsel %vm207, %v576, %v578
  %v643 = vsel %vm207, %v578, %v580
  %v644 = vsel %vm207, %v580, %v582
  %v645 = vsel %vm207, %v584, %v586
  %v646 = vsel %vm207, %v586, %v588
  %v647 = vsel %vm207, %v588, %v590
  %v648 = vsel %vm207, %v592, %v594
  %v649 = vsel %vm207, %v594, %v596
  %v650 = vsel %vm207, %v596, %v598
  %v651 = vsel %vm207, %v600, %v602
  %v652 = vsel %vm207, %v602, %v604
  %v653 = vsel %vm207, %v604, %v606
  %v654 = vsel %vm207, %v608, %v610
  %v655 = vsel %vm207, %v610, %v612
  %v656 = vsel %vm207, %v612, %v614
  %v657 = vsel %vm207, %v616, %v618
  %v658 = vsel %vm207, %v618, %v620
  %v659 = vsel %vm207, %v620, %v622
  %v660 = vsel %vm207, %v624, %v626
  %v661 = vsel %vm207, %v626, %v628
  %v662 = vsel %vm207, %v628, %v630
  %v663 = vsel %vm207, %v632, %v634
  %v664 = vsel %vm207, %v634, %v636
  %v665 = vsel %vm207, %v636, %v638
  %v694 = vsel %vm262, %v464, 0
  %696 = vmatprep.subr.mxu0 %v640
  %697 = vmatpush1.msra.mxu0 %v639
  %698 = vmatprep.subr.mxu0 %v643
  %699 = vmatpush1.msra.mxu0 %v642
  %700 = vmatprep.subr.mxu0 %v646
  %701 = vmatpush1.msra.mxu0 %v645
  %702 = vmatprep.subr.mxu0 %v649
  %703 = vmatpush1.msra.mxu0 %v648
  %704 = vmatprep.subr.mxu0 %v652
  %705 = vmatpush1.msra.mxu0 %v651
  %706 = vmatprep.subr.mxu0 %v655
  %707 = vmatpush1.msra.mxu0 %v654
  %708 = vmatprep.subr.mxu0 %v658
  %709 = vmatpush1.msra.mxu0 %v657
  %710 = vmatprep.subr.mxu0 %v661
  %711 = vmatpush1.msra.mxu0 %v660
  %712 = vmatprep.subr.mxu0 %v664
  %713 = vmatpush1.msra.mxu0 %v663
  %714 = vmatprep.subr.mxu0 0.0
  %715 = vmatpush1.msra.mxu0 0.0
  %716 = vmatprep.subr.mxu0 0.0
  %717 = vmatpush1.msra.mxu0 0.0
  %718 = vmatprep.subr.mxu0 0.0
  %719 = vmatpush1.msra.mxu0 0.0
  %720 = vmatprep.subr.mxu0 0.0
  %721 = vmatpush1.msra.mxu0 0.0
  %722 = vmatprep.subr.mxu0 0.0
  %723 = vmatpush1.msra.mxu0 0.0
  %724 = vmatprep.subr.mxu0 0.0
  %725 = vmatpush1.msra.mxu0 0.0
  %726 = vmatprep.subr.mxu0 0.0
  %727 = vmatpush1.msra.mxu0 0.0
  %728 = vmatprep.subr.mxu0 0.0
  %729 = vmatpush1.msra.mxu0 0.0
  %730 = vmatprep.subr.mxu0 0.0
  %731 = vmatpush1.msra.mxu0 0.0
  %732 = vmatprep.subr.mxu0 0.0
  %733 = vmatpush1.msra.mxu0 0.0
  %734 = vmatprep.subr.mxu0 0.0
  %735 = vmatpush1.msra.mxu0 0.0
  %736 = vmatprep.subr.mxu0 0.0
  %737 = vmatpush1.msra.mxu0 0.0
  %738 = vmatprep.subr.mxu0 0.0
  %739 = vmatpush1.msra.mxu0 0.0
  %740 = vmatprep.subr.mxu0 0.0
  %741 = vmatpush1.msra.mxu0 0.0
  %742 = vmatprep.subr.mxu0 0.0
  %743 = vmatpush1.msra.mxu0 0.0
  %744 = vmatprep.subr.mxu0 0.0
  %745 = vmatpush1.msra.mxu0 0.0
  %746 = vmatprep.subr.mxu0 0.0
  %747 = vmatpush1.msra.mxu0 0.0
  %748 = vmatprep.subr.mxu0 0.0
  %749 = vmatpush1.msra.mxu0 0.0
  %750 = vmatprep.subr.mxu0 0.0
  %751 = vmatpush1.msra.mxu0 0.0
  %752 = vmatprep.subr.mxu0 0.0
  %753 = vmatpush1.msra.mxu0 0.0
  %754 = vmatprep.subr.mxu0 0.0
  %755 = vmatpush1.msra.mxu0 0.0
  %756 = vmatprep.subr.mxu0 0.0
  %757 = vmatpush1.msra.mxu0 0.0
  %758 = vmatprep.subr.mxu0 0.0
  %759 = vmatpush1.msra.mxu0 0.0
  %760 = vmatprep.mubr.f32.mxu0 0.0
  %761 = vmatmul.mubr.f32.gmra.mrb[0].mxu0 %v694
  %v762 = vpop.f32.mrb[0].mxu0
  %v763 = vadd.f32 %v565, %v762
  %v764 = vpop.f32.mrb[0].mxu0
  %v765 = vadd.f32 %v565, %v764
  %766 = vdwg.mxu0
  %767 = vmatprep.subr.mxu0 0.0
  %768 = vmatpush1.msra.mxu0 %v641
  %769 = vmatprep.subr.mxu0 0.0
  %770 = vmatpush1.msra.mxu0 %v644
  %771 = vmatprep.subr.mxu0 0.0
  %772 = vmatpush1.msra.mxu0 %v647
  %773 = vmatprep.subr.mxu0 0.0
  %774 = vmatpush1.msra.mxu0 %v650
  %775 = vmatprep.subr.mxu0 0.0
  %776 = vmatpush1.msra.mxu0 %v653
  %777 = vmatprep.subr.mxu0 0.0
  %778 = vmatpush1.msra.mxu0 %v656
  %779 = vmatprep.subr.mxu0 0.0
  %780 = vmatpush1.msra.mxu0 %v659
  %781 = vmatprep.subr.mxu0 0.0
  %782 = vmatpush1.msra.mxu0 %v662
  %783 = vmatprep.subr.mxu0 0.0
  %784 = vmatpush1.msra.mxu0 %v665
  %785 = vmatprep.subr.mxu0 0.0
  %786 = vmatpush1.msra.mxu0 0.0
  %787 = vmatprep.subr.mxu0 0.0
  %788 = vmatpush1.msra.mxu0 0.0
  %789 = vmatprep.subr.mxu0 0.0
  %790 = vmatpush1.msra.mxu0 0.0
  %791 = vmatprep.subr.mxu0 0.0
  %792 = vmatpush1.msra.mxu0 0.0
  %793 = vmatprep.subr.mxu0 0.0
  %794 = vmatpush1.msra.mxu0 0.0
  %795 = vmatprep.subr.mxu0 0.0
  %796 = vmatpush1.msra.mxu0 0.0
  %797 = vmatprep.subr.mxu0 0.0
  %798 = vmatpush1.msra.mxu0 0.0
  %799 = vmatprep.subr.mxu0 0.0
  %800 = vmatpush1.msra.mxu0 0.0
  %801 = vmatprep.subr.mxu0 0.0
  %802 = vmatpush1.msra.mxu0 0.0
  %803 = vmatprep.subr.mxu0 0.0
  %804 = vmatpush1.msra.mxu0 0.0
  %805 = vmatprep.subr.mxu0 0.0
  %806 = vmatpush1.msra.mxu0 0.0
  %807 = vmatprep.subr.mxu0 0.0
  %808 = vmatpush1.msra.mxu0 0.0
  %809 = vmatprep.subr.mxu0 0.0
  %810 = vmatpush1.msra.mxu0 0.0
  %811 = vmatprep.subr.mxu0 0.0
  %812 = vmatpush1.msra.mxu0 0.0
  %813 = vmatprep.subr.mxu0 0.0
  %814 = vmatpush1.msra.mxu0 0.0
  %815 = vmatprep.subr.mxu0 0.0
  %816 = vmatpush1.msra.mxu0 0.0
  %817 = vmatprep.subr.mxu0 0.0
  %818 = vmatpush1.msra.mxu0 0.0
  %819 = vmatprep.subr.mxu0 0.0
  %820 = vmatpush1.msra.mxu0 0.0
  %821 = vmatprep.subr.mxu0 0.0
  %822 = vmatpush1.msra.mxu0 0.0
  %823 = vmatprep.subr.mxu0 0.0
  %824 = vmatpush1.msra.mxu0 0.0
  %825 = vmatprep.subr.mxu0 0.0
  %826 = vmatpush1.msra.mxu0 0.0
  %827 = vmatprep.subr.mxu0 0.0
  %828 = vmatpush1.msra.mxu0 0.0
  %829 = vmatprep.subr.mxu0 0.0
  %830 = vmatpush1.msra.mxu0 0.0
  %831 = vmatprep.mubr.f32.mxu0 0.0
  %832 = vmatmul.mubr.f32.gmra.mrb[0].mxu0 %v694
  %v833 = vpop.f32.mrb[0].mxu0
  %v834 = vadd.f32 %v565, %v833
  %v835 = vpop.f32.mrb[0].mxu0
  %836 = vdwg.mxu0
  %v837 = vld [vmem:[%s0] sm:$0xff]
  %v838 = vld [vmem:[%s0 + $0x8] sm:$0xff]
  %v839 = vld [vmem:[%s0 + $0x10] sm:$0xff]
  %v840 = vld [vmem:[%s0 + $0x18] sm:$0xff]
  %845 = vrot.lane.b32.xlu0 %v837, 92
  %v846 = vpop.permute.xlu0 %845
  %847 = vrot.lane.b32.xlu0 %v838, 92
  %v848 = vpop.permute.xlu0 %847
  %849 = vrot.lane.b32.xlu0 %v839, 92
  %v850 = vpop.permute.xlu0 %849
  %851 = vrot.lane.b32.xlu0 %v840, 92
  %v852 = vpop.permute.xlu0 %851
  %v853 = vsel %vm101, %v846, %v848
  %v854 = vsel %vm101, %v848, %v850
  %v855 = vsel %vm101, %v850, %v852
  %v859 = vadd.f32 %v763, %v853
  %v860 = vadd.f32 %v765, %v854
  %v861 = vadd.f32 %v834, %v855
  %862 = vst [vmem:[%s6] sm:$0xff] %v859
  %863 = vst [vmem:[%s6 + $0x8] sm:$0xff] %v860
  %864 = vst [vmem:[%s6 + $0x10] sm:$0xff] %v861
  // Predicated region
  $region30: #{resnet_block.1} parent=0 // pred_check
    _
  $region31: #{resnet_block.1} parent=0 // pred_check_branch
    %866 = sbr.rel (0) target = $region33
  $region32: #{resnet_block.1} parent=0 // pred_region
    _
  $region33: #{resnet_block.1} parent=0 // pred_fallthru
    _
  // Predicated region
  $region34: #{resnet_block.1} parent=0 // pred_check
    _
  $region35: #{resnet_block.1} parent=0 // pred_check_branch
    %868 = sbr.rel (0) target = $region37
  $region36: #{resnet_block.1} parent=0 // pred_region
    _
  $region37: #{resnet_block.1} parent=0 // pred_fallthru
    _

</llo_original>
